<compile_context>
chip_gen: v5e
topology: v5e:2x2
jax: 0.10.0
libtpu: 0.0.40
codegen_flags: <defaults>
</compile_context>

<pallas_src>
import functools

import jax
import jax.numpy as jnp
from jax.experimental import pallas as pl
from jax.experimental.pallas import tpu as pltpu

GEM_P = 3.0          # GeM pooling power (MinkLoc3Dv2 default)
GEM_EPS = 1e-6       # GeM clamp epsilon
NORM_EPS = 1e-12     # F.normalize epsilon
LANES = 128


def _round_up(x, m):
    return (x + m - 1) // m * m


def minkloc_kernel(x_ref, w_ref, b_ref, o_ref, acc_ref, *,
                   n_valid, n_pad_cols, c_valid, tile_n, mask_chans):
    # x_ref:   (C_in, tile_n)        lane-dense spatial tile (batch dim squeezed)
    # w_ref:   (C_feat_pad, C_in)    backbone 1x1-conv weight, transposed (resident)
    # b_ref:   (C_feat_pad, 1)       backbone bias (resident)
    # o_ref:   (C_feat_pad, 1)       normalized descriptor for this batch element
    # acc_ref: (C_feat_pad, 128) f32 GeM partial-sum accumulator (VMEM scratch)
    #
    # NOTE: correctness of the accumulator depends on the spatial/reduction axis
    # being the innermost grid dimension (n_idx == 0 fires once per batch element).
    n_idx = pl.program_id(1)

    @pl.when(n_idx == 0)
    def _init():
        acc_ref[...] = jnp.zeros_like(acc_ref)

    x = x_ref[...]                               # native dtype
    wT = w_ref[...]
    bias = b_ref[...].astype(jnp.float32)        # (C_feat_pad, 1)

    # Backbone: per-location linear projection, single 2-D MXU matmul, f32 accum.
    feat = jnp.dot(wT, x, preferred_element_type=jnp.float32) + bias
    # Fused ReLU + GeM clamp (eps > 0 makes the ReLU redundant).
    clamped = jnp.maximum(feat, GEM_EPS)
    # GeM p=3: explicit cube on the VPU (avoids exp/log over the hot tensor).
    c3 = clamped * clamped * clamped             # (C_feat_pad, tile_n)

    # Accumulate 128-lane chunks with pure VPU adds (static slices); the single
    # cross-lane (XLU) reduction is deferred to the finalize step.
    acc = acc_ref[...]
    for j in range(tile_n // LANES):
        acc = acc + c3[:, j * LANES:(j + 1) * LANES]
    acc_ref[...] = acc

    @pl.when(n_idx == pl.num_programs(1) - 1)
    def _finalize():
        total = jnp.sum(acc_ref[...], axis=1, keepdims=True)   # (C_feat_pad, 1)
        if n_pad_cols:
            # Zero-padded spatial columns (x = 0) each contribute exactly
            # max(bias, eps)^3; subtract the closed-form correction once here
            # instead of masking rows inside the hot loop.
            pc = jnp.maximum(bias, GEM_EPS)
            total = total - float(n_pad_cols) * (pc * pc * pc)
        # Mean over the true spatial count; clamp guards fp round-off (the exact
        # value is >= eps^3 by construction).
        pooled = jnp.maximum(total * (1.0 / n_valid), GEM_EPS ** GEM_P)
        gem = pooled ** (1.0 / GEM_P)                           # tiny (C_feat_pad, 1)
        if mask_chans:
            ch = jax.lax.broadcasted_iota(jnp.int32, gem.shape, 0)
            gem = jnp.where(ch < c_valid, gem, 0.0)
        # F.normalize(x, dim=1): x / max(||x||, eps) == x * rsqrt(max(||x||^2, eps^2))
        ssq = jnp.sum(gem * gem, axis=0, keepdims=True)
        inv_norm = jax.lax.rsqrt(jnp.maximum(ssq, NORM_EPS * NORM_EPS))
        o_ref[...] = (gem * inv_norm).astype(o_ref.dtype)


def minkloc_forward(x_nchw, weight, bias, *, tile_n=2048):
    """x_nchw: (B, C_in, H, W); weight: (C_in, C_feat); bias: (C_feat,)."""
    B, C_in, H, W = x_nchw.shape
    N = H * W
    C_feat = weight.shape[1]
    C_feat_pad = _round_up(C_feat, LANES)          # lane-/sublane-friendly channel dim

    tile_n = min(_round_up(tile_n, LANES), _round_up(N, LANES))
    n_tiles = pl.cdiv(N, tile_n)
    N_pad = n_tiles * tile_n

    # Channels-first (B, C_in, N): a free reshape of NCHW, spatial axis lane-dense.
    x = x_nchw.reshape(B, C_in, N)
    if N_pad != N:
        x = jnp.pad(x, ((0, 0), (0, 0), (0, N_pad - N)))

    wT = weight.T                                  # (C_feat, C_in)
    b2 = bias.reshape(C_feat, 1)
    if C_feat_pad != C_feat:
        wT = jnp.pad(wT, ((0, C_feat_pad - C_feat), (0, 0)))
        b2 = jnp.pad(b2, ((0, C_feat_pad - C_feat), (0, 0)))

    kernel = functools.partial(
        minkloc_kernel,
        n_valid=N, n_pad_cols=N_pad - N, c_valid=C_feat, tile_n=tile_n,
        mask_chans=(C_feat_pad != C_feat))

    itemsize = jnp.dtype(x.dtype).itemsize
    cost = pl.CostEstimate(
        flops=2 * B * N_pad * C_in * C_feat_pad,
        transcendentals=2 * B * C_feat_pad,
        bytes_accessed=(B * C_in * N_pad * itemsize
                        + C_feat_pad * (C_in + 1) * itemsize
                        + B * C_feat_pad * 4))

    out = pl.pallas_call(
        kernel,
        out_shape=jax.ShapeDtypeStruct((B, C_feat_pad, 1), jnp.float32),
        grid_spec=pltpu.PrefetchScalarGridSpec(
            num_scalar_prefetch=0,
            grid=(B, n_tiles),                          # N (reduction) axis last
            in_specs=[
                pl.BlockSpec((None, C_in, tile_n), lambda b, n: (b, 0, n)),
                pl.BlockSpec((C_feat_pad, C_in), lambda b, n: (0, 0)),
                pl.BlockSpec((C_feat_pad, 1), lambda b, n: (0, 0)),
            ],
            out_specs=pl.BlockSpec((None, C_feat_pad, 1), lambda b, n: (b, 0, 0)),
            scratch_shapes=[pltpu.VMEM((C_feat_pad, LANES), jnp.float32)],
        ),
        compiler_params=pltpu.CompilerParams(
            dimension_semantics=("parallel", "arbitrary")),
        cost_estimate=cost,
    )(x, wT, b2)

    return out.reshape(B, C_feat_pad)[:, :C_feat]


def _reference(x_nchw, weight, bias):
    """Pure-JAX reference: 1x1-conv + ReLU -> GeM -> L2 normalize."""
    B, C_in, H, W = x_nchw.shape
    x = jnp.transpose(x_nchw, (0, 2, 3, 1)).reshape(B, H * W, C_in)
    feat = jnp.maximum(jnp.einsum('bnc,cf->bnf', x, weight) + bias, 0.0)
    gem = jnp.mean(jnp.maximum(feat, GEM_EPS) ** GEM_P, axis=1) ** (1.0 / GEM_P)
    norm = jnp.linalg.norm(gem, axis=1, keepdims=True)
    return gem / jnp.maximum(norm, NORM_EPS)


def _run_case(key, B, C_in, H, W, C_feat):
    k_x, k_w, k_b = jax.random.split(key, 3)
    x = jax.random.normal(k_x, (B, C_in, H, W), dtype=jnp.float32)
    weight = jax.random.normal(k_w, (C_in, C_feat), dtype=jnp.float32) * 0.1
    bias = jax.random.normal(k_b, (C_feat,), dtype=jnp.float32) * 0.01

    out = jax.block_until_ready(minkloc_forward(x, weight, bias))
    assert out.shape == (B, C_feat), out.shape
    # sanity: embeddings are L2-normalized (normalize_embeddings=True path)
    norms = jnp.linalg.norm(out, axis=1)
    assert jnp.allclose(norms, 1.0, atol=1e-4), norms
    # correctness vs pure-JAX reference
    ref = _reference(x, weight, bias)
    assert jnp.allclose(out, ref, atol=1e-4, rtol=1e-4), jnp.max(jnp.abs(out - ref))
    return out


if __name__ == "__main__":
    key = jax.random.PRNGKey(0)
    k1, k2 = jax.random.split(key, 2)

    # Primary config: small synthetic "densified point cloud" input.
    _run_case(k1, B=2, C_in=4, H=16, W=16, C_feat=32)     # N multiple of 128
    # Secondary config exercises the zero-pad correction path (N=120 -> pad to 128).
    _run_case(k2, B=2, C_in=4, H=10, W=12, C_feat=32)

    print("KERNEL_OK")
</pallas_src>

<mosaic_0001>
module attributes {stable_mosaic.version = 11 : i64} {
  func.func @minkloc_kernel(%arg0: i32, %arg1: i32, %arg2: memref<1x4x256xf32, #tpu.memory_space<vmem>>, %arg3: memref<128x4xf32, #tpu.memory_space<vmem>>, %arg4: memref<128x1xf32, #tpu.memory_space<vmem>>, %arg5: memref<1x128x1xf32, #tpu.memory_space<vmem>>, %arg6: memref<128x128xf32, #tpu.memory_space<vmem>>) attributes {dimension_semantics = [#tpu.dimension_semantics<parallel>, #tpu.dimension_semantics<arbitrary>], iteration_bounds = array<i64: 2, 1>, scalar_prefetch = 0 : i64, scratch_operands = 1 : i64, tpu.core_type = #tpu.core_type<tc>, window_params = [{transform_indices = @transform_0, window_bounds = array<i64: 1, 4, 256>}, {pipeline_mode = #tpu.pipeline_mode<synchronous>, transform_indices = @transform_1, window_bounds = array<i64: 128, 4>}, {pipeline_mode = #tpu.pipeline_mode<synchronous>, transform_indices = @transform_2, window_bounds = array<i64: 128, 1>}, {transform_indices = @transform_3, window_bounds = array<i64: 1, 128, 1>}]} {
    %c0_i32 = arith.constant 0 : i32
    %0 = arith.cmpi eq, %arg1, %c0_i32 : i32
    %1 = arith.extui %0 : i1 to i32
    %c0_i32_0 = arith.constant 0 : i32
    %2 = arith.cmpi ne, %1, %c0_i32_0 : i32
    scf.if %2 {
      %cst_14 = arith.constant 0.000000e+00 : f32
      %23 = vector.broadcast %cst_14 : f32 to vector<128x128xf32>
      %c0_15 = arith.constant 0 : index
      %c0_16 = arith.constant 0 : index
      %24 = vector.load %arg6[%c0_15, %c0_16] : memref<128x128xf32, #tpu.memory_space<vmem>>, vector<128x128xf32>
      tpu.vector_store %arg6[%c0_15, %c0_16], %23 {strides = array<i32>} : memref<128x128xf32, #tpu.memory_space<vmem>>, vector<128x128xf32>,
    } else {
    }
    %c0 = arith.constant 0 : index
    %c0_1 = arith.constant 0 : index
    %c0_2 = arith.constant 0 : index
    %3 = vector.load %arg2[%c0, %c0_1, %c0_2] : memref<1x4x256xf32, #tpu.memory_space<vmem>>, vector<1x4x256xf32>
    %4 = vector.shape_cast %3 : vector<1x4x256xf32> to vector<4x256xf32>
    %c0_3 = arith.constant 0 : index
    %c0_4 = arith.constant 0 : index
    %5 = vector.load %arg3[%c0_3, %c0_4] : memref<128x4xf32, #tpu.memory_space<vmem>>, vector<128x4xf32>
    %c0_5 = arith.constant 0 : index
    %c0_6 = arith.constant 0 : index
    %6 = vector.load %arg4[%c0_5, %c0_6] : memref<128x1xf32, #tpu.memory_space<vmem>>, vector<128x1xf32>
    %cst = arith.constant dense<0.000000e+00> : vector<128x256xf32>
    %7 = tpu.matmul %5, %4, %cst {dimension_numbers = #tpu.dot_dimension_numbers<[1], [0], [0], [1], [0, 0, 1, 1], [], []>} : vector<128x4xf32>, vector<4x256xf32>, vector<128x256xf32> -> vector<128x256xf32>
    %8 = vector.broadcast %6 : vector<128x1xf32> to vector<128x256xf32>
    %9 = arith.addf %7, %8 : vector<128x256xf32>
    %cst_7 = arith.constant 9.99999997E-7 : f32
    %10 = vector.broadcast %cst_7 : f32 to vector<128x256xf32>
    %11 = arith.maximumf %9, %10 : vector<128x256xf32>
    %12 = arith.mulf %11, %11 : vector<128x256xf32>
    %13 = arith.mulf %12, %11 : vector<128x256xf32>
    %c0_8 = arith.constant 0 : index
    %c0_9 = arith.constant 0 : index
    %14 = vector.load %arg6[%c0_8, %c0_9] : memref<128x128xf32, #tpu.memory_space<vmem>>, vector<128x128xf32>
    %15 = vector.extract_strided_slice %13 {offsets = [0, 0], sizes = [128, 128], strides = [1, 1]} : vector<128x256xf32> to vector<128x128xf32>
    %16 = arith.addf %14, %15 : vector<128x128xf32>
    %17 = vector.extract_strided_slice %13 {offsets = [0, 128], sizes = [128, 128], strides = [1, 1]} : vector<128x256xf32> to vector<128x128xf32>
    %18 = arith.addf %16, %17 : vector<128x128xf32>
    %c0_10 = arith.constant 0 : index
    %c0_11 = arith.constant 0 : index
    %19 = vector.load %arg6[%c0_10, %c0_11] : memref<128x128xf32, #tpu.memory_space<vmem>>, vector<128x128xf32>
    tpu.vector_store %arg6[%c0_10, %c0_11], %18 {strides = array<i32>} : memref<128x128xf32, #tpu.memory_space<vmem>>, vector<128x128xf32>,
    %c0_i32_12 = arith.constant 0 : i32
    %20 = arith.cmpi eq, %arg1, %c0_i32_12 : i32
    %21 = arith.extui %20 : i1 to i32
    %c0_i32_13 = arith.constant 0 : i32
    %22 = arith.cmpi ne, %21, %c0_i32_13 : i32
    scf.if %22 {
      %c0_14 = arith.constant 0 : index
      %c0_15 = arith.constant 0 : index
      %23 = vector.load %arg6[%c0_14, %c0_15] : memref<128x128xf32, #tpu.memory_space<vmem>>, vector<128x128xf32>
      %cst_16 = arith.constant dense<0.000000e+00> : vector<128xf32>
      %24 = vector.multi_reduction <add>, %23, %cst_16 [1] : vector<128x128xf32> to vector<128xf32>
      %25 = vector.shape_cast %24 : vector<128xf32> to vector<128x1xf32>
      %cst_17 = arith.constant 3.906250e-03 : f32
      %26 = vector.broadcast %cst_17 : f32 to vector<128x1xf32>
      %27 = arith.mulf %25, %26 : vector<128x1xf32>
      %cst_18 = arith.constant 1.000000e-18 : f32
      %28 = vector.broadcast %cst_18 : f32 to vector<128x1xf32>
      %29 = arith.maximumf %27, %28 : vector<128x1xf32>
      %cst_19 = arith.constant 0.333333343 : f32
      %30 = vector.broadcast %cst_19 : f32 to vector<128x1xf32>
      %31 = math.powf %29, %30 : vector<128x1xf32>
      %32 = tpu.iota {dimensions = array<i32: 0>} : vector<128x1xi32>
      %c32_i32 = arith.constant 32 : i32
      %33 = vector.broadcast %c32_i32 : i32 to vector<128x1xi32>
      %34 = arith.cmpi slt, %32, %33 : vector<128x1xi32>
      %cst_20 = arith.constant 0.000000e+00 : f32
      %35 = vector.broadcast %cst_20 : f32 to vector<128x1xf32>
      %36 = arith.select %34, %31, %35 : vector<128x1xi1>, vector<128x1xf32>
      %37 = arith.mulf %36, %36 : vector<128x1xf32>
      %cst_21 = arith.constant dense<0.000000e+00> : vector<1xf32>
      %38 = vector.multi_reduction <add>, %37, %cst_21 [0] : vector<128x1xf32> to vector<1xf32>
      %39 = vector.shape_cast %38 : vector<1xf32> to vector<1x1xf32>
      %cst_22 = arith.constant 1.000000e-24 : f32
      %40 = vector.broadcast %cst_22 : f32 to vector<1x1xf32>
      %41 = arith.maximumf %39, %40 : vector<1x1xf32>
      %42 = math.rsqrt %41 : vector<1x1xf32>
      %43 = vector.broadcast %42 : vector<1x1xf32> to vector<128x1xf32>
      %44 = arith.mulf %36, %43 : vector<128x1xf32>
      %c0_23 = arith.constant 0 : index
      %c0_24 = arith.constant 0 : index
      %c0_25 = arith.constant 0 : index
      %45 = vector.load %arg5[%c0_23, %c0_24, %c0_25] : memref<1x128x1xf32, #tpu.memory_space<vmem>>, vector<1x128x1xf32>
      %46 = vector.shape_cast %45 : vector<1x128x1xf32> to vector<128x1xf32>
      %47 = vector.shape_cast %44 : vector<128x1xf32> to vector<1x128x1xf32>
      tpu.vector_store %arg5[%c0_23, %c0_24, %c0_25], %47 {strides = array<i32>} : memref<1x128x1xf32, #tpu.memory_space<vmem>>, vector<1x128x1xf32>,
    } else {
    }
    return
  }
  func.func @transform_0(%arg0: i32, %arg1: i32) -> (i32, i32, i32) {
    %c0_i32 = arith.constant 0 : i32
    %c0_i32_0 = arith.constant 0 : i32
    return %arg0, %c0_i32, %arg1 : i32, i32, i32
  }
  func.func @transform_1(%arg0: i32, %arg1: i32) -> (i32, i32) {
    %c0_i32 = arith.constant 0 : i32
    %c0_i32_0 = arith.constant 0 : i32
    %c0_i32_1 = arith.constant 0 : i32
    return %c0_i32, %c0_i32_0 : i32, i32
  }
  func.func @transform_2(%arg0: i32, %arg1: i32) -> (i32, i32) {
    %c0_i32 = arith.constant 0 : i32
    %c0_i32_0 = arith.constant 0 : i32
    %c0_i32_1 = arith.constant 0 : i32
    return %c0_i32, %c0_i32_0 : i32, i32
  }
  func.func @transform_3(%arg0: i32, %arg1: i32) -> (i32, i32, i32) {
    %c0_i32 = arith.constant 0 : i32
    %c0_i32_0 = arith.constant 0 : i32
    %c0_i32_1 = arith.constant 0 : i32
    return %arg0, %c0_i32, %c0_i32_0 : i32, i32, i32
  }
}

</mosaic_0001>

<llo_original>
// kernel: tpu_custom_call.1
$region0: #{tpu_custom_call.1}
  #allocation0 [shape = 'u32[]', space=smem, size = 0x4, offset = 0x4, fixed_abs, tag = 'smem constant byte address 0x4 - core index']
  #allocation1 [shape = 'u32[72,128]{1,0:T(1,128)}', space=vmem, size = 0x9000, scoped, tag = 'internal scratch']
  #allocation2 [shape = 'f32[128,128]{1,0:T(8,128)}', space=vmem, size = 0x10000, scoped, tag = 'scratch operand']
  %s0 = inlined_call_operand.vmem [shape: f32[2,4,256], index: 0, kind: input, shape index: {}]
  %s1 = inlined_call_operand.vmem [shape: f32[128,4], index: 1, kind: input, shape index: {}]
  %s2 = inlined_call_operand.vmem [shape: f32[128,1], index: 2, kind: input, shape index: {}]
  %s3 = inlined_call_operand.vmem [shape: f32[2,128,1], index: 3, kind: output, shape index: {}]
  %s4 = sld [smem:[#allocation0]]
  $region53: #{tpu_custom_call.1} parent=0
    _
  %s6 = ssub.s32 1, %s4
  %s7 = scalar_select 0, %s6, %s4
  loop: start=0, step=1, limit=4
  $region2: #{tpu_custom_call.1} parent=0 // loop_pre_header
    _
  $region3: #{tpu_custom_call.1} parent=0 // loop_header
    %s9 = sphi 0, %s13
    %p10 = scmp.ge.s32.totalorder %s9, 4
    %s16 = sphi 0, %s28
    %s17 = sphi 0, %s24
    %s18 = sphi 0, %s16
    %s19 = sphi 0, %s17
    %s20 = sphi 0, %s18
    %s21 = sphi 0, %s19
    %s33 = sphi 0, %s35
    %s36 = sphi 0, %s33
    %s37 = sphi 0, %s36
    %s53 = sphi 0, %s37
    %s57 = sphi 0, %s57
    %s59 = sphi 0, %s57
    %s60 = sphi 0, %s59
    %s74 = sphi 0, %s60
    %s78 = sphi 0, %s78
    %s80 = sphi 0, %s78
    %s81 = sphi 0, %s80
    %s95 = sphi 0, %s81
    %s101 = sphi 0, %s103
    %s104 = sphi 0, %s101
    %s105 = sphi 0, %s104
    %s121 = sphi 0, %s105
  $region4: #{tpu_custom_call.1} parent=0 // loop_header_branch
    %12 = sbr.rel (%p10) target = $region8
  $region5: #{tpu_custom_call.1} parent=0 // loop_body
    %s14 = ssub.s32 %s9, 1
    %s15 = ssub.s32 %s9, 2
    %s22 = sadd.s32 1, %s17
    %p23 = scmp.ge.s32.totalorder %s22, 1
    %s24 = scalar_select %p23, 0, %s22
    %s25 = sadd.s32 1, %s16
    %s26 = scalar_select %p23, %s25, %s16
    %p27 = scmp.ge.s32.totalorder %s26, 2
    %s28 = scalar_select %p27, 0, %s26
    %s29 = ssub.s32 %s16, %s28
    %s30 = ssub.s32 %s17, %s24
    %s31 = sor.u32 %s29, %s30
    %p32 = scmp.eq.s32.totalorder %s31, 0
    %s34 = sadd.s32 %s33, 1
    %s35 = scalar_select %p32, %s33, %s34
    %p38 = pneg %p32
    %p39 = scmp.eq.s32.totalorder %s9, 1
    %p40 = por %p38, %p39
    %p41 = scmp.ne.s32.totalorder %s33, %s36
    %p42 = scmp.eq.s32.totalorder %s9, 0
    %p43 = por %p41, %p42
    %p44 = scmp.ne.s32.totalorder %s33, %s36
    %p45 = scmp.eq.s32.totalorder %s14, 1
    %p46 = por %p44, %p45
    %p47 = scmp.ne.s32.totalorder %s36, %s37
    %p48 = scmp.eq.s32.totalorder %s14, 0
    %p49 = por %p47, %p48
    %p50 = scmp.ne.s32.totalorder %s36, %s37
    %p51 = scmp.eq.s32.totalorder %s15, 1
    %p52 = por %p50, %p51
    %p54 = scmp.ne.s32.totalorder %s37, %s53
    %p55 = scmp.eq.s32.totalorder %s15, 0
    %p56 = por %p54, %p55
    %s58 = sadd.s32 %s57, 1
    %p61 = scmp.eq.s32.totalorder %s9, 1
    %p62 = scmp.ne.s32.totalorder %s57, %s59
    %p63 = scmp.eq.s32.totalorder %s9, 0
    %p64 = por %p62, %p63
    %p65 = scmp.ne.s32.totalorder %s57, %s59
    %p66 = scmp.eq.s32.totalorder %s14, 1
    %p67 = por %p65, %p66
    %p68 = scmp.ne.s32.totalorder %s59, %s60
    %p69 = scmp.eq.s32.totalorder %s14, 0
    %p70 = por %p68, %p69
    %p71 = scmp.ne.s32.totalorder %s59, %s60
    %p72 = scmp.eq.s32.totalorder %s15, 1
    %p73 = por %p71, %p72
    %p75 = scmp.ne.s32.totalorder %s60, %s74
    %p76 = scmp.eq.s32.totalorder %s15, 0
    %p77 = por %p75, %p76
    %s79 = sadd.s32 %s78, 1
    %p82 = scmp.eq.s32.totalorder %s9, 1
    %p83 = scmp.ne.s32.totalorder %s78, %s80
    %p84 = scmp.eq.s32.totalorder %s9, 0
    %p85 = por %p83, %p84
    %p86 = scmp.ne.s32.totalorder %s78, %s80
    %p87 = scmp.eq.s32.totalorder %s14, 1
    %p88 = por %p86, %p87
    %p89 = scmp.ne.s32.totalorder %s80, %s81
    %p90 = scmp.eq.s32.totalorder %s14, 0
    %p91 = por %p89, %p90
    %p92 = scmp.ne.s32.totalorder %s80, %s81
    %p93 = scmp.eq.s32.totalorder %s15, 1
    %p94 = por %p92, %p93
    %p96 = scmp.ne.s32.totalorder %s81, %s95
    %p97 = scmp.eq.s32.totalorder %s15, 0
    %p98 = por %p96, %p97
    %s99 = ssub.s32 %s16, %s28
    %p100 = scmp.eq.s32.totalorder %s99, 0
    %s102 = sadd.s32 %s101, 1
    %s103 = scalar_select %p100, %s101, %s102
    %p106 = pneg %p100
    %p107 = scmp.eq.s32.totalorder %s9, 1
    %p108 = por %p106, %p107
    %p109 = scmp.ne.s32.totalorder %s101, %s104
    %p110 = scmp.eq.s32.totalorder %s9, 0
    %p111 = por %p109, %p110
    %p112 = scmp.ne.s32.totalorder %s101, %s104
    %p113 = scmp.eq.s32.totalorder %s14, 1
    %p114 = por %p112, %p113
    %p115 = scmp.ne.s32.totalorder %s104, %s105
    %p116 = scmp.eq.s32.totalorder %s14, 0
    %p117 = por %p115, %p116
    %p118 = scmp.ne.s32.totalorder %s104, %s105
    %p119 = scmp.eq.s32.totalorder %s15, 1
    %p120 = por %p118, %p119
    %p122 = scmp.ne.s32.totalorder %s105, %s121
    %p123 = scmp.eq.s32.totalorder %s15, 0
    %p124 = por %p122, %p123
    %p125 = scmp.le.s32.totalorder 1, %s9
    %p126 = scmp.lt.s32.totalorder %s9, 3
    %p127 = pnand %p125, %p126
    %p128 = pneg %p127
    // Predicated region
    $region9: #{tpu_custom_call.1} parent=5 // pred_check
      _
    $region10: #{tpu_custom_call.1} parent=5 // pred_check_branch
      %130 = sbr.rel (%p127) target = $region12
    $region11: #{tpu_custom_call.1} parent=5 // pred_region
      %s131 = ssub.s32 %s9, 1
      // Predicated region
      $region13: #{tpu_custom_call.1} parent=11 // pred_check
        %p132 = pneg %p70
      $region14: #{tpu_custom_call.1} parent=11 // pred_check_branch
        %134 = sbr.rel (%p132) target = $region16
      $region15: #{tpu_custom_call.1} parent=11 // pred_region
        _
      $region16: #{tpu_custom_call.1} parent=11 // pred_fallthru
        _
      // Predicated region
      $region17: #{tpu_custom_call.1} parent=11 // pred_check
        %p135 = pneg %p91
      $region18: #{tpu_custom_call.1} parent=11 // pred_check_branch
        %137 = sbr.rel (%p135) target = $region20
      $region19: #{tpu_custom_call.1} parent=11 // pred_region
        _
      $region20: #{tpu_custom_call.1} parent=11 // pred_fallthru
        _
    $region12: #{tpu_custom_call.1} parent=5 // pred_fallthru
      _
    %p138 = scmp.lt.s32.totalorder %s9, 2
    // Predicated region
    $region21: #{tpu_custom_call.1} parent=5 // pred_check
      %p139 = pneg %p138
    $region22: #{tpu_custom_call.1} parent=5 // pred_check_branch
      %141 = sbr.rel (%p139) target = $region24
    $region23: #{tpu_custom_call.1} parent=5 // pred_region
      // Predicated region
      $region25: #{tpu_custom_call.1} parent=23 // pred_check
        %p142 = pneg %p43
      $region26: #{tpu_custom_call.1} parent=23 // pred_check_branch
        %144 = sbr.rel (%p142) target = $region28
      $region27: #{tpu_custom_call.1} parent=23 // pred_region
        %s145 = smul.u32 2, %s17
        %p146 = scmp.lt.s32.totalorder %s16, 1
        %s147 = scalar_select %p146, %s16, 1
        %p148 = scmp.lt.s32.totalorder %s145, 1
        %s149 = scalar_select %p148, %s145, 1
        %s150 = smul.addr %s147, 2
        %s151 = sadd.s32 %s149, %s150
        %s152 = smul.addr %s151, 4
        %s153 = scalar_lea.vmem %s0, %s152
        %s154 = smul.u32 2, %s17
      $region28: #{tpu_custom_call.1} parent=23 // pred_fallthru
        _
    $region24: #{tpu_custom_call.1} parent=5 // pred_fallthru
      _
    %p155 = scmp.le.s32.totalorder 1, %s9
    %p156 = scmp.lt.s32.totalorder %s9, 3
    %p157 = pnand %p155, %p156
    %p158 = pneg %p157
    // Predicated region
    $region29: #{tpu_custom_call.1} parent=5 // pred_check
      _
    $region30: #{tpu_custom_call.1} parent=5 // pred_check_branch
      %160 = sbr.rel (%p157) target = $region32
    $region31: #{tpu_custom_call.1} parent=5 // pred_region
      %s161 = ssub.s32 %s9, 1
      %s162 = smul.u32 2, %s19
      %p163 = scmp.lt.s32.totalorder %s18, 1
      %s164 = scalar_select %p163, %s18, 1
      %p165 = scmp.lt.s32.totalorder %s162, 1
      %s166 = scalar_select %p165, %s162, 1
      %s167 = smul.addr %s164, 2
      %s168 = sadd.s32 %s166, %s167
      %s169 = smul.addr %s168, 4
      %s170 = scalar_lea.vmem %s0, %s169
      %p171 = pneg %p49
      %p172 = pneg %p46
      %p173 = pneg %p70
      %p174 = pneg %p67
      %p175 = pneg %p91
      %p176 = pneg %p88
      %p177 = pneg %p117
      %p178 = pneg %p114
      %p179 = scmp.lt.s32.totalorder %s18, 1
      %s180 = scalar_select %p179, %s18, 1
      %s181 = smul.addr %s180, 16
      %s182 = smul.addr %s181, 8
      %s183 = scalar_lea.vmem %s3, %s182
      %s184 = smul.u32 2, %s19
      %p185 = scmp.lt.s32.totalorder %s18, 1
      %s186 = scalar_select %p185, %s18, 1
      %p187 = scmp.lt.s32.totalorder %s184, 1
      %s188 = scalar_select %p187, %s184, 1
      %s189 = smul.addr %s186, 2
      %s190 = sadd.s32 %s188, %s189
      %s191 = smul.addr %s190, 4
      %s192 = scalar_lea.vmem %s0, %s191
      %s193 = smul.u32 2, %s19
      %p194 = scmp.lt.s32.totalorder %s18, 1
      %s195 = scalar_select %p194, %s18, 1
      %s196 = smul.addr %s195, 16
      %s197 = smul.addr %s196, 8
      %s198 = scalar_lea.vmem %s3, %s197
      %p199 = scmp.eq.s32.totalorder %s19, 0
      // Predicated region
      $region33: #{tpu_custom_call.1} parent=31 // pred_check
        %p200 = pneg %p199
      $region34: #{tpu_custom_call.1} parent=31 // pred_check_branch
        %202 = sbr.rel (%p200) target = $region36
      $region35: #{tpu_custom_call.1} parent=31 // pred_region
        %203 = vst [vmem:[#allocation2] sm:$0xff] 0.0
        %204 = vst [vmem:[#allocation2 + $0x8] sm:$0xff] 0.0
        %205 = vst [vmem:[#allocation2 + $0x10] sm:$0xff] 0.0
        %206 = vst [vmem:[#allocation2 + $0x18] sm:$0xff] 0.0
        %207 = vst [vmem:[#allocation2 + $0x20] sm:$0xff] 0.0
        %208 = vst [vmem:[#allocation2 + $0x28] sm:$0xff] 0.0
        %209 = vst [vmem:[#allocation2 + $0x30] sm:$0xff] 0.0
        %210 = vst [vmem:[#allocation2 + $0x38] sm:$0xff] 0.0
        %211 = vst [vmem:[#allocation2 + $0x40] sm:$0xff] 0.0
        %212 = vst [vmem:[#allocation2 + $0x48] sm:$0xff] 0.0
        %213 = vst [vmem:[#allocation2 + $0x50] sm:$0xff] 0.0
        %214 = vst [vmem:[#allocation2 + $0x58] sm:$0xff] 0.0
        %215 = vst [vmem:[#allocation2 + $0x60] sm:$0xff] 0.0
        %216 = vst [vmem:[#allocation2 + $0x68] sm:$0xff] 0.0
        %217 = vst [vmem:[#allocation2 + $0x70] sm:$0xff] 0.0
        %218 = vst [vmem:[#allocation2 + $0x78] sm:$0xff] 0.0
      $region36: #{tpu_custom_call.1} parent=31 // pred_fallthru
        _
      %v219 = vld [vmem:[%s192] sm:$0xff]
      %v220 = vld [vmem:[%s1] sm:$0xff]
      %v221 = vld [vmem:[%s1 + $0x8] sm:$0xff]
      %v222 = vld [vmem:[%s1 + $0x10] sm:$0xff]
      %v223 = vld [vmem:[%s1 + $0x18] sm:$0xff]
      %v224 = vld [vmem:[%s1 + $0x20] sm:$0xff]
      %v225 = vld [vmem:[%s1 + $0x28] sm:$0xff]
      %v226 = vld [vmem:[%s1 + $0x30] sm:$0xff]
      %v227 = vld [vmem:[%s1 + $0x38] sm:$0xff]
      %v228 = vld [vmem:[%s1 + $0x40] sm:$0xff]
      %v229 = vld [vmem:[%s1 + $0x48] sm:$0xff]
      %v230 = vld [vmem:[%s1 + $0x50] sm:$0xff]
      %v231 = vld [vmem:[%s1 + $0x58] sm:$0xff]
      %v232 = vld [vmem:[%s1 + $0x60] sm:$0xff]
      %v233 = vld [vmem:[%s1 + $0x68] sm:$0xff]
      %v234 = vld [vmem:[%s1 + $0x70] sm:$0xff]
      %v235 = vld [vmem:[%s1 + $0x78] sm:$0xff]
      %v236 = vld [vmem:[%s2] sm:$0xff]
      %v237 = vld [vmem:[%s2 + $0x8] sm:$0xff]
      %v238 = vld [vmem:[%s2 + $0x10] sm:$0xff]
      %v239 = vld [vmem:[%s2 + $0x18] sm:$0xff]
      %v240 = vld [vmem:[%s2 + $0x20] sm:$0xff]
      %v241 = vld [vmem:[%s2 + $0x28] sm:$0xff]
      %v242 = vld [vmem:[%s2 + $0x30] sm:$0xff]
      %v243 = vld [vmem:[%s2 + $0x38] sm:$0xff]
      %v244 = vld [vmem:[%s2 + $0x40] sm:$0xff]
      %v245 = vld [vmem:[%s2 + $0x48] sm:$0xff]
      %v246 = vld [vmem:[%s2 + $0x50] sm:$0xff]
      %v247 = vld [vmem:[%s2 + $0x58] sm:$0xff]
      %v248 = vld [vmem:[%s2 + $0x60] sm:$0xff]
      %v249 = vld [vmem:[%s2 + $0x68] sm:$0xff]
      %v250 = vld [vmem:[%s2 + $0x70] sm:$0xff]
      %v251 = vld [vmem:[%s2 + $0x78] sm:$0xff]
      %253 = vset.pattern.permute.xlu0 0
      %254 = vperm.xlu0 %253, %v236
      %v255 = vpop.permute.xlu0 %254
      %258 = vset.pattern.permute.xlu0 0
      %259 = vperm.xlu0 %258, %v237
      %v260 = vpop.permute.xlu0 %259
      %263 = vset.pattern.permute.xlu0 0
      %264 = vperm.xlu0 %263, %v238
      %v265 = vpop.permute.xlu0 %264
      %268 = vset.pattern.permute.xlu0 0
      %269 = vperm.xlu0 %268, %v239
      %v270 = vpop.permute.xlu0 %269
      %273 = vset.pattern.permute.xlu0 0
      %274 = vperm.xlu0 %273, %v240
      %v275 = vpop.permute.xlu0 %274
      %278 = vset.pattern.permute.xlu0 0
      %279 = vperm.xlu0 %278, %v241
      %v280 = vpop.permute.xlu0 %279
      %283 = vset.pattern.permute.xlu0 0
      %284 = vperm.xlu0 %283, %v242
      %v285 = vpop.permute.xlu0 %284
      %288 = vset.pattern.permute.xlu0 0
      %289 = vperm.xlu0 %288, %v243
      %v290 = vpop.permute.xlu0 %289
      %293 = vset.pattern.permute.xlu0 0
      %294 = vperm.xlu0 %293, %v244
      %v295 = vpop.permute.xlu0 %294
      %298 = vset.pattern.permute.xlu0 0
      %299 = vperm.xlu0 %298, %v245
      %v300 = vpop.permute.xlu0 %299
      %303 = vset.pattern.permute.xlu0 0
      %304 = vperm.xlu0 %303, %v246
      %v305 = vpop.permute.xlu0 %304
      %308 = vset.pattern.permute.xlu0 0
      %309 = vperm.xlu0 %308, %v247
      %v310 = vpop.permute.xlu0 %309
      %313 = vset.pattern.permute.xlu0 0
      %314 = vperm.xlu0 %313, %v248
      %v315 = vpop.permute.xlu0 %314
      %318 = vset.pattern.permute.xlu0 0
      %319 = vperm.xlu0 %318, %v249
      %v320 = vpop.permute.xlu0 %319
      %323 = vset.pattern.permute.xlu0 0
      %324 = vperm.xlu0 %323, %v250
      %v325 = vpop.permute.xlu0 %324
      %328 = vset.pattern.permute.xlu0 0
      %329 = vperm.xlu0 %328, %v251
      %v330 = vpop.permute.xlu0 %329
      %333 = vst [vmem:[#allocation1] ss:$2 sm:$0xff] %v219
      %v334 = vld.sshfl [vmem:[#allocation1] sm:$0xff pattern:$0x75316420]
      %v335 = vld.sshfl [vmem:[#allocation1 + $0x8] sm:$0xff pattern:$0x75316420]
      %vm336 = vcmask 31744
      %v338 = vsel %vm336, %v220, 0
      %v341 = vsel %vm336, %v221, 0
      %v344 = vsel %vm336, %v222, 0
      %v347 = vsel %vm336, %v223, 0
      %v350 = vsel %vm336, %v224, 0
      %v353 = vsel %vm336, %v225, 0
      %v356 = vsel %vm336, %v226, 0
      %v359 = vsel %vm336, %v227, 0
      %v362 = vsel %vm336, %v228, 0
      %v365 = vsel %vm336, %v229, 0
      %v368 = vsel %vm336, %v230, 0
      %v371 = vsel %vm336, %v231, 0
      %v374 = vsel %vm336, %v232, 0
      %v377 = vsel %vm336, %v233, 0
      %v380 = vsel %vm336, %v234, 0
      %v383 = vsel %vm336, %v235, 0
      %vm385 = vcmask 1043456
      %v386 = vsel %vm385, %v334, 0
      %v388 = vsel %vm385, %v335, 0
      %390 = vmatpush.msra.mxu0 0.0
      %391 = vmatpush.msra.mxu0 0.0
      %392 = vmatpush.msra.mxu0 0.0
      %393 = vmatpush.msra.mxu0 0.0
      %394 = vmatpush.msra.mxu0 0.0
      %395 = vmatpush.msra.mxu0 0.0
      %396 = vmatpush.msra.mxu0 0.0
      %397 = vmatpush.msra.mxu0 0.0
      %398 = vmatpush.msra.mxu0 0.0
      %399 = vmatpush.msra.mxu0 0.0
      %400 = vmatpush.msra.mxu0 0.0
      %401 = vmatpush.msra.mxu0 0.0
      %402 = vmatpush.msra.mxu0 0.0
      %403 = vmatpush.msra.mxu0 0.0
      %404 = vmatpush.msra.mxu0 0.0
      %405 = vmatpush.msra.mxu0 %v386
      %406 = vmatmul.f32.gmra.mxu0 %v338
      %v407 = vpop.f32.mrf.mxu0
      %v408 = vadd.f32 %v255, %v407
      %409 = vmatmul.f32.gmra.mxu0 %v341
      %v410 = vpop.f32.mrf.mxu0
      %v411 = vadd.f32 %v260, %v410
      %412 = vmatmul.f32.gmra.mxu0 %v344
      %v413 = vpop.f32.mrf.mxu0
      %v414 = vadd.f32 %v265, %v413
      %415 = vmatmul.f32.gmra.mxu0 %v347
      %v416 = vpop.f32.mrf.mxu0
      %v417 = vadd.f32 %v270, %v416
      %418 = vmatmul.f32.gmra.mxu0 %v350
      %v419 = vpop.f32.mrf.mxu0
      %v420 = vadd.f32 %v275, %v419
      %421 = vmatmul.f32.gmra.mxu0 %v353
      %v422 = vpop.f32.mrf.mxu0
      %v423 = vadd.f32 %v280, %v422
      %424 = vmatmul.f32.gmra.mxu0 %v356
      %v425 = vpop.f32.mrf.mxu0
      %v426 = vadd.f32 %v285, %v425
      %427 = vmatmul.f32.gmra.mxu0 %v359
      %v428 = vpop.f32.mrf.mxu0
      %v429 = vadd.f32 %v290, %v428
      %430 = vmatmul.f32.gmra.mxu0 %v362
      %v431 = vpop.f32.mrf.mxu0
      %v432 = vadd.f32 %v295, %v431
      %433 = vmatmul.f32.gmra.mxu0 %v365
      %v434 = vpop.f32.mrf.mxu0
      %v435 = vadd.f32 %v300, %v434
      %436 = vmatmul.f32.gmra.mxu0 %v368
      %v437 = vpop.f32.mrf.mxu0
      %v438 = vadd.f32 %v305, %v437
      %439 = vmatmul.f32.gmra.mxu0 %v371
      %v440 = vpop.f32.mrf.mxu0
      %v441 = vadd.f32 %v310, %v440
      %442 = vmatmul.f32.gmra.mxu0 %v374
      %v443 = vpop.f32.mrf.mxu0
      %v444 = vadd.f32 %v315, %v443
      %445 = vmatmul.f32.gmra.mxu0 %v377
      %v446 = vpop.f32.mrf.mxu0
      %v447 = vadd.f32 %v320, %v446
      %448 = vmatmul.f32.gmra.mxu0 %v380
      %v449 = vpop.f32.mrf.mxu0
      %v450 = vadd.f32 %v325, %v449
      %451 = vmatmul.f32.gmra.mxu0 %v383
      %v452 = vpop.f32.mrf.mxu0
      %v453 = vadd.f32 %v330, %v452
      %454 = vdwg.mxu0
      %455 = vmatpush.msra.mxu0 0.0
      %456 = vmatpush.msra.mxu0 0.0
      %457 = vmatpush.msra.mxu0 0.0
      %458 = vmatpush.msra.mxu0 0.0
      %459 = vmatpush.msra.mxu0 0.0
      %460 = vmatpush.msra.mxu0 0.0
      %461 = vmatpush.msra.mxu0 0.0
      %462 = vmatpush.msra.mxu0 0.0
      %463 = vmatpush.msra.mxu0 0.0
      %464 = vmatpush.msra.mxu0 0.0
      %465 = vmatpush.msra.mxu0 0.0
      %466 = vmatpush.msra.mxu0 0.0
      %467 = vmatpush.msra.mxu0 0.0
      %468 = vmatpush.msra.mxu0 0.0
      %469 = vmatpush.msra.mxu0 0.0
      %470 = vmatpush.msra.mxu0 %v388
      %471 = vmatmul.f32.gmra.mxu0 %v338
      %v472 = vpop.f32.mrf.mxu0
      %v473 = vadd.f32 %v255, %v472
      %474 = vmatmul.f32.gmra.mxu0 %v341
      %v475 = vpop.f32.mrf.mxu0
      %v476 = vadd.f32 %v260, %v475
      %477 = vmatmul.f32.gmra.mxu0 %v344
      %v478 = vpop.f32.mrf.mxu0
      %v479 = vadd.f32 %v265, %v478
      %480 = vmatmul.f32.gmra.mxu0 %v347
      %v481 = vpop.f32.mrf.mxu0
      %v482 = vadd.f32 %v270, %v481
      %483 = vmatmul.f32.gmra.mxu0 %v350
      %v484 = vpop.f32.mrf.mxu0
      %v485 = vadd.f32 %v275, %v484
      %486 = vmatmul.f32.gmra.mxu0 %v353
      %v487 = vpop.f32.mrf.mxu0
      %v488 = vadd.f32 %v280, %v487
      %489 = vmatmul.f32.gmra.mxu0 %v356
      %v490 = vpop.f32.mrf.mxu0
      %v491 = vadd.f32 %v285, %v490
      %492 = vmatmul.f32.gmra.mxu0 %v359
      %v493 = vpop.f32.mrf.mxu0
      %v494 = vadd.f32 %v290, %v493
      %495 = vmatmul.f32.gmra.mxu0 %v362
      %v496 = vpop.f32.mrf.mxu0
      %v497 = vadd.f32 %v295, %v496
      %498 = vmatmul.f32.gmra.mxu0 %v365
      %v499 = vpop.f32.mrf.mxu0
      %v500 = vadd.f32 %v300, %v499
      %501 = vmatmul.f32.gmra.mxu0 %v368
      %v502 = vpop.f32.mrf.mxu0
      %v503 = vadd.f32 %v305, %v502
      %504 = vmatmul.f32.gmra.mxu0 %v371
      %v505 = vpop.f32.mrf.mxu0
      %v506 = vadd.f32 %v310, %v505
      %507 = vmatmul.f32.gmra.mxu0 %v374
      %v508 = vpop.f32.mrf.mxu0
      %v509 = vadd.f32 %v315, %v508
      %510 = vmatmul.f32.gmra.mxu0 %v377
      %v511 = vpop.f32.mrf.mxu0
      %v512 = vadd.f32 %v320, %v511
      %513 = vmatmul.f32.gmra.mxu0 %v380
      %v514 = vpop.f32.mrf.mxu0
      %v515 = vadd.f32 %v325, %v514
      %516 = vmatmul.f32.gmra.mxu0 %v383
      %v517 = vpop.f32.mrf.mxu0
      %v518 = vadd.f32 %v330, %v517
      %519 = vdwg.mxu0
      %v520 = vmax.f32 %v408, 1e-06
      %v521 = vmax.f32 %v473, 1e-06
      %v522 = vmax.f32 %v411, 1e-06
      %v523 = vmax.f32 %v476, 1e-06
      %v524 = vmax.f32 %v414, 1e-06
      %v525 = vmax.f32 %v479, 1e-06
      %v526 = vmax.f32 %v417, 1e-06
      %v527 = vmax.f32 %v482, 1e-06
      %v528 = vmax.f32 %v420, 1e-06
      %v529 = vmax.f32 %v485, 1e-06
      %v530 = vmax.f32 %v423, 1e-06
      %v531 = vmax.f32 %v488, 1e-06
      %v532 = vmax.f32 %v426, 1e-06
      %v533 = vmax.f32 %v491, 1e-06
      %v534 = vmax.f32 %v429, 1e-06
      %v535 = vmax.f32 %v494, 1e-06
      %v536 = vmax.f32 %v432, 1e-06
      %v537 = vmax.f32 %v497, 1e-06
      %v538 = vmax.f32 %v435, 1e-06
      %v539 = vmax.f32 %v500, 1e-06
      %v540 = vmax.f32 %v438, 1e-06
      %v541 = vmax.f32 %v503, 1e-06
      %v542 = vmax.f32 %v441, 1e-06
      %v543 = vmax.f32 %v506, 1e-06
      %v544 = vmax.f32 %v444, 1e-06
      %v545 = vmax.f32 %v509, 1e-06
      %v546 = vmax.f32 %v447, 1e-06
      %v547 = vmax.f32 %v512, 1e-06
      %v548 = vmax.f32 %v450, 1e-06
      %v549 = vmax.f32 %v515, 1e-06
      %v550 = vmax.f32 %v453, 1e-06
      %v551 = vmax.f32 %v518, 1e-06
      %v552 = vmul.f32 %v520, %v520
      %v553 = vmul.f32 %v521, %v521
      %v554 = vmul.f32 %v522, %v522
      %v555 = vmul.f32 %v523, %v523
      %v556 = vmul.f32 %v524, %v524
      %v557 = vmul.f32 %v525, %v525
      %v558 = vmul.f32 %v526, %v526
      %v559 = vmul.f32 %v527, %v527
      %v560 = vmul.f32 %v528, %v528
      %v561 = vmul.f32 %v529, %v529
      %v562 = vmul.f32 %v530, %v530
      %v563 = vmul.f32 %v531, %v531
      %v564 = vmul.f32 %v532, %v532
      %v565 = vmul.f32 %v533, %v533
      %v566 = vmul.f32 %v534, %v534
      %v567 = vmul.f32 %v535, %v535
      %v568 = vmul.f32 %v536, %v536
      %v569 = vmul.f32 %v537, %v537
      %v570 = vmul.f32 %v538, %v538
      %v571 = vmul.f32 %v539, %v539
      %v572 = vmul.f32 %v540, %v540
      %v573 = vmul.f32 %v541, %v541
      %v574 = vmul.f32 %v542, %v542
      %v575 = vmul.f32 %v543, %v543
      %v576 = vmul.f32 %v544, %v544
      %v577 = vmul.f32 %v545, %v545
      %v578 = vmul.f32 %v546, %v546
      %v579 = vmul.f32 %v547, %v547
      %v580 = vmul.f32 %v548, %v548
      %v581 = vmul.f32 %v549, %v549
      %v582 = vmul.f32 %v550, %v550
      %v583 = vmul.f32 %v551, %v551
      %v584 = vmul.f32 %v552, %v520
      %v585 = vmul.f32 %v553, %v521
      %v586 = vmul.f32 %v554, %v522
      %v587 = vmul.f32 %v555, %v523
      %v588 = vmul.f32 %v556, %v524
      %v589 = vmul.f32 %v557, %v525
      %v590 = vmul.f32 %v558, %v526
      %v591 = vmul.f32 %v559, %v527
      %v592 = vmul.f32 %v560, %v528
      %v593 = vmul.f32 %v561, %v529
      %v594 = vmul.f32 %v562, %v530
      %v595 = vmul.f32 %v563, %v531
      %v596 = vmul.f32 %v564, %v532
      %v597 = vmul.f32 %v565, %v533
      %v598 = vmul.f32 %v566, %v534
      %v599 = vmul.f32 %v567, %v535
      %v600 = vmul.f32 %v568, %v536
      %v601 = vmul.f32 %v569, %v537
      %v602 = vmul.f32 %v570, %v538
      %v603 = vmul.f32 %v571, %v539
      %v604 = vmul.f32 %v572, %v540
      %v605 = vmul.f32 %v573, %v541
      %v606 = vmul.f32 %v574, %v542
      %v607 = vmul.f32 %v575, %v543
      %v608 = vmul.f32 %v576, %v544
      %v609 = vmul.f32 %v577, %v545
      %v610 = vmul.f32 %v578, %v546
      %v611 = vmul.f32 %v579, %v547
      %v612 = vmul.f32 %v580, %v548
      %v613 = vmul.f32 %v581, %v549
      %v614 = vmul.f32 %v582, %v550
      %v615 = vmul.f32 %v583, %v551
      %v616 = vld [vmem:[#allocation2] sm:$0xff]
      %v617 = vld [vmem:[#allocation2 + $0x8] sm:$0xff]
      %v618 = vld [vmem:[#allocation2 + $0x10] sm:$0xff]
      %v619 = vld [vmem:[#allocation2 + $0x18] sm:$0xff]
      %v620 = vld [vmem:[#allocation2 + $0x20] sm:$0xff]
      %v621 = vld [vmem:[#allocation2 + $0x28] sm:$0xff]
      %v622 = vld [vmem:[#allocation2 + $0x30] sm:$0xff]
      %v623 = vld [vmem:[#allocation2 + $0x38] sm:$0xff]
      %v624 = vld [vmem:[#allocation2 + $0x40] sm:$0xff]
      %v625 = vld [vmem:[#allocation2 + $0x48] sm:$0xff]
      %v626 = vld [vmem:[#allocation2 + $0x50] sm:$0xff]
      %v627 = vld [vmem:[#allocation2 + $0x58] sm:$0xff]
      %v628 = vld [vmem:[#allocation2 + $0x60] sm:$0xff]
      %v629 = vld [vmem:[#allocation2 + $0x68] sm:$0xff]
      %v630 = vld [vmem:[#allocation2 + $0x70] sm:$0xff]
      %v631 = vld [vmem:[#allocation2 + $0x78] sm:$0xff]
      %v632 = vadd.f32 %v616, %v584
      %v633 = vadd.f32 %v617, %v586
      %v634 = vadd.f32 %v618, %v588
      %v635 = vadd.f32 %v619, %v590
      %v636 = vadd.f32 %v620, %v592
      %v637 = vadd.f32 %v621, %v594
      %v638 = vadd.f32 %v622, %v596
      %v639 = vadd.f32 %v623, %v598
      %v640 = vadd.f32 %v624, %v600
      %v641 = vadd.f32 %v625, %v602
      %v642 = vadd.f32 %v626, %v604
      %v643 = vadd.f32 %v627, %v606
      %v644 = vadd.f32 %v628, %v608
      %v645 = vadd.f32 %v629, %v610
      %v646 = vadd.f32 %v630, %v612
      %v647 = vadd.f32 %v631, %v614
      %v648 = vadd.f32 %v632, %v585
      %v649 = vadd.f32 %v633, %v587
      %v650 = vadd.f32 %v634, %v589
      %v651 = vadd.f32 %v635, %v591
      %v652 = vadd.f32 %v636, %v593
      %v653 = vadd.f32 %v637, %v595
      %v654 = vadd.f32 %v638, %v597
      %v655 = vadd.f32 %v639, %v599
      %v656 = vadd.f32 %v640, %v601
      %v657 = vadd.f32 %v641, %v603
      %v658 = vadd.f32 %v642, %v605
      %v659 = vadd.f32 %v643, %v607
      %v660 = vadd.f32 %v644, %v609
      %v661 = vadd.f32 %v645, %v611
      %v662 = vadd.f32 %v646, %v613
      %v663 = vadd.f32 %v647, %v615
      %664 = vst [vmem:[#allocation2] sm:$0xff] %v648
      %665 = vst [vmem:[#allocation2 + $0x8] sm:$0xff] %v649
      %666 = vst [vmem:[#allocation2 + $0x10] sm:$0xff] %v650
      %667 = vst [vmem:[#allocation2 + $0x18] sm:$0xff] %v651
      %668 = vst [vmem:[#allocation2 + $0x20] sm:$0xff] %v652
      %669 = vst [vmem:[#allocation2 + $0x28] sm:$0xff] %v653
      %670 = vst [vmem:[#allocation2 + $0x30] sm:$0xff] %v654
      %671 = vst [vmem:[#allocation2 + $0x38] sm:$0xff] %v655
      %672 = vst [vmem:[#allocation2 + $0x40] sm:$0xff] %v656
      %673 = vst [vmem:[#allocation2 + $0x48] sm:$0xff] %v657
      %674 = vst [vmem:[#allocation2 + $0x50] sm:$0xff] %v658
      %675 = vst [vmem:[#allocation2 + $0x58] sm:$0xff] %v659
      %676 = vst [vmem:[#allocation2 + $0x60] sm:$0xff] %v660
      %677 = vst [vmem:[#allocation2 + $0x68] sm:$0xff] %v661
      %678 = vst [vmem:[#allocation2 + $0x70] sm:$0xff] %v662
      %679 = vst [vmem:[#allocation2 + $0x78] sm:$0xff] %v663
      // Predicated region
      $region37: #{tpu_custom_call.1} parent=31 // pred_check
        %p680 = pneg %p199
      $region38: #{tpu_custom_call.1} parent=31 // pred_check_branch
        %682 = sbr.rel (%p680) target = $region40
      $region39: #{tpu_custom_call.1} parent=31 // pred_region
        %v683 = vld [vmem:[#allocation2] sm:$0xff]
        %v684 = vld [vmem:[#allocation2 + $0x8] sm:$0xff]
        %v685 = vld [vmem:[#allocation2 + $0x10] sm:$0xff]
        %v686 = vld [vmem:[#allocation2 + $0x18] sm:$0xff]
        %v687 = vld [vmem:[#allocation2 + $0x20] sm:$0xff]
        %v688 = vld [vmem:[#allocation2 + $0x28] sm:$0xff]
        %v689 = vld [vmem:[#allocation2 + $0x30] sm:$0xff]
        %v690 = vld [vmem:[#allocation2 + $0x38] sm:$0xff]
        %v691 = vld [vmem:[#allocation2 + $0x40] sm:$0xff]
        %v692 = vld [vmem:[#allocation2 + $0x48] sm:$0xff]
        %v693 = vld [vmem:[#allocation2 + $0x50] sm:$0xff]
        %v694 = vld [vmem:[#allocation2 + $0x58] sm:$0xff]
        %v695 = vld [vmem:[#allocation2 + $0x60] sm:$0xff]
        %v696 = vld [vmem:[#allocation2 + $0x68] sm:$0xff]
        %v697 = vld [vmem:[#allocation2 + $0x70] sm:$0xff]
        %v698 = vld [vmem:[#allocation2 + $0x78] sm:$0xff]
        %699 = vadd.xlane.f32.xlu0 %v683
        %v700 = vpop.xlane.xlu0 %699
        %701 = vadd.xlane.f32.xlu0 %v684
        %v702 = vpop.xlane.xlu0 %701
        %703 = vadd.xlane.f32.xlu0 %v685
        %v704 = vpop.xlane.xlu0 %703
        %705 = vadd.xlane.f32.xlu0 %v686
        %v706 = vpop.xlane.xlu0 %705
        %707 = vadd.xlane.f32.xlu0 %v687
        %v708 = vpop.xlane.xlu0 %707
        %709 = vadd.xlane.f32.xlu0 %v688
        %v710 = vpop.xlane.xlu0 %709
        %711 = vadd.xlane.f32.xlu0 %v689
        %v712 = vpop.xlane.xlu0 %711
        %713 = vadd.xlane.f32.xlu0 %v690
        %v714 = vpop.xlane.xlu0 %713
        %715 = vadd.xlane.f32.xlu0 %v691
        %v716 = vpop.xlane.xlu0 %715
        %717 = vadd.xlane.f32.xlu0 %v692
        %v718 = vpop.xlane.xlu0 %717
        %719 = vadd.xlane.f32.xlu0 %v693
        %v720 = vpop.xlane.xlu0 %719
        %721 = vadd.xlane.f32.xlu0 %v694
        %v722 = vpop.xlane.xlu0 %721
        %723 = vadd.xlane.f32.xlu0 %v695
        %v724 = vpop.xlane.xlu0 %723
        %725 = vadd.xlane.f32.xlu0 %v696
        %v726 = vpop.xlane.xlu0 %725
        %727 = vadd.xlane.f32.xlu0 %v697
        %v728 = vpop.xlane.xlu0 %727
        %729 = vadd.xlane.f32.xlu0 %v698
        %v730 = vpop.xlane.xlu0 %729
        %v731 = vmul.f32 %v700, 0.00390625
        %v732 = vmul.f32 %v702, 0.00390625
        %v733 = vmul.f32 %v704, 0.00390625
        %v734 = vmul.f32 %v706, 0.00390625
        %v735 = vmul.f32 %v708, 0.00390625
        %v736 = vmul.f32 %v710, 0.00390625
        %v737 = vmul.f32 %v712, 0.00390625
        %v738 = vmul.f32 %v714, 0.00390625
        %v739 = vmul.f32 %v716, 0.00390625
        %v740 = vmul.f32 %v718, 0.00390625
        %v741 = vmul.f32 %v720, 0.00390625
        %v742 = vmul.f32 %v722, 0.00390625
        %v743 = vmul.f32 %v724, 0.00390625
        %v744 = vmul.f32 %v726, 0.00390625
        %v745 = vmul.f32 %v728, 0.00390625
        %v746 = vmul.f32 %v730, 0.00390625
        %v747 = vmax.f32 %v731, 1e-18
        %v748 = vmax.f32 %v732, 1e-18
        %v749 = vmax.f32 %v733, 1e-18
        %v750 = vmax.f32 %v734, 1e-18
        %v751 = vmax.f32 %v735, 1e-18
        %v752 = vmax.f32 %v736, 1e-18
        %v753 = vmax.f32 %v737, 1e-18
        %v754 = vmax.f32 %v738, 1e-18
        %v755 = vmax.f32 %v739, 1e-18
        %v756 = vmax.f32 %v740, 1e-18
        %v757 = vmax.f32 %v741, 1e-18
        %v758 = vmax.f32 %v742, 1e-18
        %v759 = vmax.f32 %v743, 1e-18
        %v760 = vmax.f32 %v744, 1e-18
        %v761 = vmax.f32 %v745, 1e-18
        %v762 = vmax.f32 %v746, 1e-18
        %v763 = vpow.f32 %v747, 0.33333334
        %v764 = vpow.f32 %v748, 0.33333334
        %v765 = vpow.f32 %v749, 0.33333334
        %v766 = vpow.f32 %v750, 0.33333334
        %v767 = vpow.f32 %v751, 0.33333334
        %v768 = vpow.f32 %v752, 0.33333334
        %v769 = vpow.f32 %v753, 0.33333334
        %v770 = vpow.f32 %v754, 0.33333334
        %v771 = vpow.f32 %v755, 0.33333334
        %v772 = vpow.f32 %v756, 0.33333334
        %v773 = vpow.f32 %v757, 0.33333334
        %v774 = vpow.f32 %v758, 0.33333334
        %v775 = vpow.f32 %v759, 0.33333334
        %v776 = vpow.f32 %v760, 0.33333334
        %v777 = vpow.f32 %v761, 0.33333334
        %v778 = vpow.f32 %v762, 0.33333334
        %v779 = vlaneseq
        %v780 = vshrl.u32 %v779, 7
        %v781 = vadd.s32 %v780, 8
        %v782 = vadd.s32 %v780, 16
        %v783 = vadd.s32 %v780, 24
        %v784 = vadd.s32 %v780, 32
        %v785 = vadd.s32 %v780, 40
        %v786 = vadd.s32 %v780, 48
        %v787 = vadd.s32 %v780, 56
        %v788 = vadd.s32 %v780, 64
        %v789 = vadd.s32 %v780, 72
        %v790 = vadd.s32 %v780, 80
        %v791 = vadd.s32 %v780, 88
        %v792 = vadd.s32 %v780, 96
        %v793 = vadd.s32 %v780, 104
        %v794 = vadd.s32 %v780, 112
        %v795 = vadd.s32 %v780, 120
        %vm796 = vcmp.lt.s32.totalorder %v780, 32
        %vm797 = vcmp.lt.s32.totalorder %v781, 32
        %vm798 = vcmp.lt.s32.totalorder %v782, 32
        %vm799 = vcmp.lt.s32.totalorder %v783, 32
        %vm800 = vcmp.lt.s32.totalorder %v784, 32
        %vm801 = vcmp.lt.s32.totalorder %v785, 32
        %vm802 = vcmp.lt.s32.totalorder %v786, 32
        %vm803 = vcmp.lt.s32.totalorder %v787, 32
        %vm804 = vcmp.lt.s32.totalorder %v788, 32
        %vm805 = vcmp.lt.s32.totalorder %v789, 32
        %vm806 = vcmp.lt.s32.totalorder %v790, 32
        %vm807 = vcmp.lt.s32.totalorder %v791, 32
        %vm808 = vcmp.lt.s32.totalorder %v792, 32
        %vm809 = vcmp.lt.s32.totalorder %v793, 32
        %vm810 = vcmp.lt.s32.totalorder %v794, 32
        %vm811 = vcmp.lt.s32.totalorder %v795, 32
        %v812 = vsel %vm796, %v763, 0.0
        %v813 = vsel %vm797, %v764, 0.0
        %v814 = vsel %vm798, %v765, 0.0
        %v815 = vsel %vm799, %v766, 0.0
        %v816 = vsel %vm800, %v767, 0.0
        %v817 = vsel %vm801, %v768, 0.0
        %v818 = vsel %vm802, %v769, 0.0
        %v819 = vsel %vm803, %v770, 0.0
        %v820 = vsel %vm804, %v771, 0.0
        %v821 = vsel %vm805, %v772, 0.0
        %v822 = vsel %vm806, %v773, 0.0
        %v823 = vsel %vm807, %v774, 0.0
        %v824 = vsel %vm808, %v775, 0.0
        %v825 = vsel %vm809, %v776, 0.0
        %v826 = vsel %vm810, %v777, 0.0
        %v827 = vsel %vm811, %v778, 0.0
        %v828 = vmul.f32 %v812, %v812
        %v829 = vmul.f32 %v813, %v813
        %v830 = vmul.f32 %v814, %v814
        %v831 = vmul.f32 %v815, %v815
        %v832 = vmul.f32 %v816, %v816
        %v833 = vmul.f32 %v817, %v817
        %v834 = vmul.f32 %v818, %v818
        %v835 = vmul.f32 %v819, %v819
        %v836 = vmul.f32 %v820, %v820
        %v837 = vmul.f32 %v821, %v821
        %v838 = vmul.f32 %v822, %v822
        %v839 = vmul.f32 %v823, %v823
        %v840 = vmul.f32 %v824, %v824
        %v841 = vmul.f32 %v825, %v825
        %v842 = vmul.f32 %v826, %v826
        %v843 = vmul.f32 %v827, %v827
        %v844 = vadd.f32 %v828, %v829
        %v845 = vadd.f32 %v844, %v830
        %v846 = vadd.f32 %v845, %v831
        %v847 = vadd.f32 %v846, %v832
        %v848 = vadd.f32 %v847, %v833
        %v849 = vadd.f32 %v848, %v834
        %v850 = vadd.f32 %v849, %v835
        %v851 = vadd.f32 %v850, %v836
        %v852 = vadd.f32 %v851, %v837
        %v853 = vadd.f32 %v852, %v838
        %v854 = vadd.f32 %v853, %v839
        %v855 = vadd.f32 %v854, %v840
        %v856 = vadd.f32 %v855, %v841
        %v857 = vadd.f32 %v856, %v842
        %v858 = vadd.f32 %v857, %v843
        %v859 = vrot.slane %v858, 4
        %v860 = vadd.f32 %v858, %v859
        %v861 = vrot.slane %v860, 2
        %v862 = vadd.f32 %v860, %v861
        %v863 = vrot.slane %v862, 1
        %v864 = vadd.f32 %v862, %v863
        %v865 = vmax.f32 %v864, 1e-24
        %v866 = vrsqrt.pop %v865
        %v867 = vmul.f32 %v866, %v865
        %v868 = vmul.f32 %v867, %v866
        %v869 = vmul.f32 0.5, %v868
        %v870 = vsub.f32 1.5, %v869
        %v871 = vmul.f32 %v866, %v870
        %vm872 = vweird.f32 %v865
        %vm873 = vweird.f32 %v866
        %vm874 = vmor %vm872, %vm873
        %v875 = vsel %vm874, %v866, %v871
        %v876 = vmul.f32 %v812, %v875
        %v877 = vmul.f32 %v813, %v875
        %v878 = vmul.f32 %v814, %v875
        %v879 = vmul.f32 %v815, %v875
        %v880 = vmul.f32 %v816, %v875
        %v881 = vmul.f32 %v817, %v875
        %v882 = vmul.f32 %v818, %v875
        %v883 = vmul.f32 %v819, %v875
        %v884 = vmul.f32 %v820, %v875
        %v885 = vmul.f32 %v821, %v875
        %v886 = vmul.f32 %v822, %v875
        %v887 = vmul.f32 %v823, %v875
        %v888 = vmul.f32 %v824, %v875
        %v889 = vmul.f32 %v825, %v875
        %v890 = vmul.f32 %v826, %v875
        %v891 = vmul.f32 %v827, %v875
        %vm892 = vcmask 7168
        %893 = vst.msk [vmem:[%s198] sm:$0xff] %vm892, %v876
        %894 = vst.msk [vmem:[%s198 + $0x8] sm:$0xff] %vm892, %v877
        %895 = vst.msk [vmem:[%s198 + $0x10] sm:$0xff] %vm892, %v878
        %896 = vst.msk [vmem:[%s198 + $0x18] sm:$0xff] %vm892, %v879
        %897 = vst.msk [vmem:[%s198 + $0x20] sm:$0xff] %vm892, %v880
        %898 = vst.msk [vmem:[%s198 + $0x28] sm:$0xff] %vm892, %v881
        %899 = vst.msk [vmem:[%s198 + $0x30] sm:$0xff] %vm892, %v882
        %900 = vst.msk [vmem:[%s198 + $0x38] sm:$0xff] %vm892, %v883
        %901 = vst.msk [vmem:[%s198 + $0x40] sm:$0xff] %vm892, %v884
        %902 = vst.msk [vmem:[%s198 + $0x48] sm:$0xff] %vm892, %v885
        %903 = vst.msk [vmem:[%s198 + $0x50] sm:$0xff] %vm892, %v886
        %904 = vst.msk [vmem:[%s198 + $0x58] sm:$0xff] %vm892, %v887
        %905 = vst.msk [vmem:[%s198 + $0x60] sm:$0xff] %vm892, %v888
        %906 = vst.msk [vmem:[%s198 + $0x68] sm:$0xff] %vm892, %v889
        %907 = vst.msk [vmem:[%s198 + $0x70] sm:$0xff] %vm892, %v890
        %908 = vst.msk [vmem:[%s198 + $0x78] sm:$0xff] %vm892, %v891
      $region40: #{tpu_custom_call.1} parent=31 // pred_fallthru
        _
      %p909 = scmp.lt.s32.totalorder %s18, 1
      %s910 = scalar_select %p909, %s18, 1
      %s911 = smul.addr %s910, 16
      %s912 = smul.addr %s911, 8
      %s913 = scalar_lea.vmem %s3, %s912
      // Predicated region
      $region41: #{tpu_custom_call.1} parent=31 // pred_check
        %p914 = pneg %p114
      $region42: #{tpu_custom_call.1} parent=31 // pred_check_branch
        %916 = sbr.rel (%p914) target = $region44
      $region43: #{tpu_custom_call.1} parent=31 // pred_region
        _
      $region44: #{tpu_custom_call.1} parent=31 // pred_fallthru
        _
    $region32: #{tpu_custom_call.1} parent=5 // pred_fallthru
      _
    %p917 = scmp.le.s32.totalorder 2, %s9
    // Predicated region
    $region45: #{tpu_custom_call.1} parent=5 // pred_check
      %p918 = pneg %p917
    $region46: #{tpu_custom_call.1} parent=5 // pred_check_branch
      %920 = sbr.rel (%p918) target = $region48
    $region47: #{tpu_custom_call.1} parent=5 // pred_region
      %s921 = ssub.s32 %s9, 2
      // Predicated region
      $region49: #{tpu_custom_call.1} parent=47 // pred_check
        %p922 = pneg %p120
      $region50: #{tpu_custom_call.1} parent=47 // pred_check_branch
        %924 = sbr.rel (%p922) target = $region52
      $region51: #{tpu_custom_call.1} parent=47 // pred_region
        %p925 = scmp.lt.s32.totalorder %s20, 1
        %s926 = scalar_select %p925, %s20, 1
        %s927 = smul.addr %s926, 16
        %s928 = smul.addr %s927, 8
        %s929 = scalar_lea.vmem %s3, %s928
      $region52: #{tpu_custom_call.1} parent=47 // pred_fallthru
        _
    $region48: #{tpu_custom_call.1} parent=5 // pred_fallthru
      _
  $region6: #{tpu_custom_call.1} parent=0 // loop_footer
    %s13 = sadd.s32 1, %s9
  $region7: #{tpu_custom_call.1} parent=0 // loop_footer_branch
    %8 = sbr.rel target = $region3
  $region8: #{tpu_custom_call.1} parent=0 // loop_exit
    _

</llo_original>
